<compile_context>
chip_gen: v7x
topology: tpu7x:2x2x1
jax: 0.10.0
libtpu: 0.0.40
codegen_flags: <defaults>
</compile_context>

<pallas_src>
import numpy as np
import jax
import jax.numpy as jnp
from jax.experimental import pallas as pl
from jax.experimental.pallas import tpu as pltpu

LANES = 128          # lane-dense padding for queries / boxes / matched pairs
_EPS = 1e-7          # guards degenerate boxes in the GIoU math

# ---- packed-buffer row layout -------------------------------------------------
# Host-packed (16, LANES) f32 buffer (single host->device transfer per forward):
_R_OPGT = 0      # rows 0..3  : op_gt^T             (op targets; queries on lanes)
_R_TGT = 4       # rows 4..7  : target_boxes^T      (cx,cy,w,h on sublanes; boxes on lanes)
_R_QMASK = 8     # row 8      : valid-query mask
_R_PMASK = 9     # row 9      : valid-matched-pair mask
_R_SCAL = 10     # row 10     : lane0 = n_queries, lane1 = num_boxes (wrapper-only)
F_ROWS = 16
# Kernel input = concat([fdata, operations^T, pred_boxes^T], axis=0) -> (24, LANES):
_R_OPS = F_ROWS          # rows 16..19 : operation logits^T
_R_PRED = F_ROWS + 4     # rows 20..23 : pred_boxes^T
K_ROWS = F_ROWS + 8


# ----------------------------------------------------------------------------
# Fused Pallas kernel
# ----------------------------------------------------------------------------
def _fused_loss_kernel(fin_ref, idx_ref, out_ref):
    """fin_ref : (24, 128) f32  packed inputs (row layout above)
       idx_ref : (2, 128) int32 row 0: row_ind (pred gather), row 1: col_ind (target gather)
       out_ref : (8, 128) f32   rows 0..2: per-lane masked partials
                                (ops L1, matched-box L1, 1-GIoU); rows 3..7 zero.
    """
    op_gt = fin_ref[_R_OPGT:_R_OPGT + 4, :]
    tgt_all = fin_ref[_R_TGT:_R_TGT + 4, :]
    q_mask = fin_ref[_R_QMASK:_R_QMASK + 1, :]
    p_mask = fin_ref[_R_PMASK:_R_PMASK + 1, :]
    ops = fin_ref[_R_OPS:_R_OPS + 4, :]
    pred_all = fin_ref[_R_PRED:_R_PRED + 4, :]

    # ---- operations L1: per-lane (per-query) partial sums, masked ----
    ops_part = jnp.sum(jnp.abs(ops - op_gt), axis=0, keepdims=True) * q_mask

    # ---- matched-box gather via one-hot matmuls on the (otherwise idle) MXU ----
    j_iota = jax.lax.broadcasted_iota(jnp.int32, (LANES, LANES), 0)
    row_idx = idx_ref[0:1, :]
    col_idx = idx_ref[1:2, :]
    onehot_r = (j_iota == row_idx).astype(jnp.float32)   # [j, k] = (row_idx[k] == j)
    onehot_c = (j_iota == col_idx).astype(jnp.float32)
    s = jnp.dot(pred_all, onehot_r, preferred_element_type=jnp.float32)  # (4,128) src boxes^T
    t = jnp.dot(tgt_all, onehot_c, preferred_element_type=jnp.float32)   # (4,128) tgt boxes^T

    # ---- matched-box L1: per-lane (per-pair) partial sums, masked ----
    l1_part = jnp.sum(jnp.abs(s - t), axis=0, keepdims=True) * p_mask

    # ---- GIoU (vectorized over (2,128): x/y rows together) ----
    s_wh = s[2:4, :]
    t_wh = t[2:4, :]
    s_lo = s[0:2, :] - 0.5 * s_wh
    s_hi = s[0:2, :] + 0.5 * s_wh
    t_lo = t[0:2, :] - 0.5 * t_wh
    t_hi = t[0:2, :] + 0.5 * t_wh

    s_area = s_wh[0:1, :] * s_wh[1:2, :]
    t_area = t_wh[0:1, :] * t_wh[1:2, :]

    i_wh = jnp.maximum(jnp.minimum(s_hi, t_hi) - jnp.maximum(s_lo, t_lo), 0.0)
    inter = i_wh[0:1, :] * i_wh[1:2, :]
    union = s_area + t_area - inter
    iou = inter / jnp.maximum(union, _EPS)

    e_wh = jnp.maximum(jnp.maximum(s_hi, t_hi) - jnp.minimum(s_lo, t_lo), 0.0)
    e_area = e_wh[0:1, :] * e_wh[1:2, :]
    giou = iou - (e_area - union) / jnp.maximum(e_area, _EPS)
    giou_part = (1.0 - giou) * p_mask

    # lane-dense output; cross-lane reduction is deferred to the wrapper
    out_ref[0:1, :] = ops_part
    out_ref[1:2, :] = l1_part
    out_ref[2:3, :] = giou_part
    out_ref[3:8, :] = jnp.zeros((5, LANES), jnp.float32)


def _fused_loss_call(kin, idata):
    return pl.pallas_call(
        _fused_loss_kernel,
        out_shape=jax.ShapeDtypeStruct((8, LANES), jnp.float32),
        in_specs=[pl.BlockSpec(memory_space=pltpu.MemorySpace.VMEM),
                  pl.BlockSpec(memory_space=pltpu.MemorySpace.VMEM)],
        out_specs=pl.BlockSpec(memory_space=pltpu.MemorySpace.VMEM),
    )(kin, idata)


@jax.jit
def _compute_losses(operations, pred_boxes, fdata, idata):
    """operations/pred_boxes: (N, 4) f32 device (model outputs).
       fdata: (16, LANES) f32 host-packed; idata: (2, LANES) int32 matched indices.
    """
    n = operations.shape[0]
    ops_t = jnp.zeros((4, LANES), jnp.float32).at[:, :n].set(operations.T)
    pred_t = jnp.zeros((4, LANES), jnp.float32).at[:, :n].set(pred_boxes.T)
    kin = jnp.concatenate([fdata, ops_t, pred_t], axis=0)          # (24, LANES)
    out = _fused_loss_call(kin, idata)
    sums = jnp.sum(out[0:3, :], axis=1)                            # one lane reduce in XLA
    denom = jnp.maximum(fdata[_R_SCAL, 1], 1.0)                    # clamp num_boxes >= 1
    return {
        'operations': sums[0] / n,
        'loss_bbox': sums[1] / denom,
        'loss_giou': sums[2] / denom,
    }


# ----------------------------------------------------------------------------
# Criterion (host glue; all numeric reductions on-chip via the fused kernel)
# ----------------------------------------------------------------------------
class RltrCriterionPallas:
    def __init__(self, losses, matcher):
        self.losses = losses
        self.matcher = matcher

    def create_gt_operation(self, outputs, gts):
        gt1, gt2 = gts
        g1 = [int(x) for x in np.asarray(gt1['labels'])]
        g2 = [int(x) for x in np.asarray(gt2['labels'])]
        add = [0, 10, 0, 0]
        keep = [0, 0, 10, 0]
        remove = [0, 0, 0, 10]
        ignore = [10, 0, 0, 0]
        op_gt = []
        for i in range(max(len(g1), len(g2))):
            gt = g1[i] if len(g1) > len(g2) else g2[i]
            if gt in g1 and gt not in g2:
                op_gt.append(remove)
            elif gt not in g1 and gt in g2:
                op_gt.append(add)
            elif gt in g1 and gt in g2:
                op_gt.append(keep)
        for _ in range(len(outputs['operations'][0]) - len(op_gt)):
            op_gt.append(ignore)
        return np.asarray(op_gt, dtype=np.float32)

    def forward(self, outputs, targets, key):
        operations = jnp.asarray(outputs['operations'][0], jnp.float32)   # (N, 4), device
        pred_boxes = jnp.asarray(outputs['pred_boxes'][0], jnp.float32)   # (N, 4), device
        n = operations.shape[0]
        assert n <= LANES and operations.shape[1] == 4

        # Categorical(logits=operations).sample() -> deterministic with fixed key.
        act = jax.random.categorical(key, operations, axis=-1)
        # TODO(synk): the device->host sync + host matcher (Hungarian assignment)
        # has no Pallas equivalent; in a real training loop overlap it with the
        # async dispatch of the next step.
        ind = np.where(np.asarray(act) != 0)[0]
        row_ind, col_ind = self.matcher(outputs, targets, ind)

        # ---- host-side static-shape preparation (pure numpy, tiny) ----
        op_gt = self.create_gt_operation(outputs, targets)                # (N, 4)
        assert op_gt.shape[0] == n, 'op_gt rows must match the query count'

        tboxes = np.asarray(targets[1]['boxes'], np.float32)              # (M, 4)
        m = len(tboxes)
        assert m <= LANES

        if len(row_ind) != 0:
            k = min(len(row_ind), LANES)
            r_idx = np.asarray(row_ind[:k], np.int32)
            c_idx = np.asarray(col_ind[:k], np.int32)
            num_boxes = k
        else:
            # "The predicted operations are all zero!" fallback path
            print('The predicted operations are all zero!')
            k = m
            r_idx = np.arange(k, dtype=np.int32)
            c_idx = np.arange(k, dtype=np.int32)
            num_boxes = m

        # ONE packed f32 buffer + ONE int32 index buffer -> two H2D transfers total.
        fdata = np.zeros((F_ROWS, LANES), np.float32)
        fdata[_R_OPGT:_R_OPGT + 4, :n] = op_gt.T
        fdata[_R_TGT:_R_TGT + 4, :m] = tboxes.T
        fdata[_R_QMASK, :n] = 1.0
        fdata[_R_PMASK, :k] = 1.0
        fdata[_R_SCAL, 0] = float(n)
        fdata[_R_SCAL, 1] = float(num_boxes)

        idata = np.zeros((2, LANES), np.int32)
        idata[0, :k] = r_idx
        idata[1, :k] = c_idx

        all_losses = _compute_losses(operations, pred_boxes, fdata, idata)

        out = {}
        for loss in self.losses:
            assert loss in ('operations', 'boxes'), f'do you really want to compute {loss} loss?'
            if loss == 'operations':
                out['operations'] = all_losses['operations']
            else:  # 'boxes'
                out['loss_bbox'] = all_losses['loss_bbox']
                out['loss_giou'] = all_losses['loss_giou']
        return out


def simple_matcher(outputs, targets, ind):
    # TODO(synk): the real RLTR matcher (Hungarian assignment) is an externally
    # injected module; stubbed here with deterministic greedy identity matching.
    n_tgt = len(np.asarray(targets[1]['boxes']))
    k = min(len(ind), n_tgt)
    return np.asarray(ind[:k], dtype=np.int64), np.arange(k, dtype=np.int64)


# ----------------------------------------------------------------------------
# Pure-numpy reference (correctness check of the on-chip math)
# ----------------------------------------------------------------------------
def _np_box_losses(src, tgt):
    def to_xyxy(b):
        cx, cy, w, h = b[:, 0], b[:, 1], b[:, 2], b[:, 3]
        return np.stack([cx - 0.5 * w, cy - 0.5 * h, cx + 0.5 * w, cy + 0.5 * h], 1)
    s, t = to_xyxy(src), to_xyxy(tgt)
    l1 = np.abs(src - tgt).sum()
    sa = (s[:, 2] - s[:, 0]) * (s[:, 3] - s[:, 1])
    ta = (t[:, 2] - t[:, 0]) * (t[:, 3] - t[:, 1])
    inter = (np.clip(np.minimum(s[:, 2], t[:, 2]) - np.maximum(s[:, 0], t[:, 0]), 0, None)
             * np.clip(np.minimum(s[:, 3], t[:, 3]) - np.maximum(s[:, 1], t[:, 1]), 0, None))
    union = sa + ta - inter
    iou = inter / union
    ea = ((np.maximum(s[:, 2], t[:, 2]) - np.minimum(s[:, 0], t[:, 0]))
          * (np.maximum(s[:, 3], t[:, 3]) - np.minimum(s[:, 1], t[:, 1])))
    giou = iou - (ea - union) / ea
    return l1, (1.0 - giou).sum()


if __name__ == "__main__":
    key = jax.random.PRNGKey(0)
    k_ops, k_pb, k_tb1, k_tb2, k_samp = jax.random.split(key, 5)

    N_Q = 8  # number of queries
    operations = jax.random.normal(k_ops, (1, N_Q, 4), jnp.float32)
    pred_boxes = jax.random.uniform(k_pb, (1, N_Q, 4), jnp.float32, 0.2, 0.6)

    gt1 = {'labels': np.array([1, 2, 3]),
           'boxes': np.asarray(jax.random.uniform(k_tb1, (3, 4), jnp.float32, 0.2, 0.6))}
    gt2 = {'labels': np.array([2, 3, 4]),
           'boxes': np.asarray(jax.random.uniform(k_tb2, (3, 4), jnp.float32, 0.2, 0.6))}

    outputs = {'operations': operations, 'pred_boxes': pred_boxes}
    targets = (gt1, gt2)

    crit = RltrCriterionPallas(losses=['operations', 'boxes'], matcher=simple_matcher)
    losses = crit.forward(outputs, targets, k_samp)
    losses = {k: jax.block_until_ready(v) for k, v in losses.items()}

    # ---- reference check (pure numpy, same deterministic sampling/matching) ----
    act = np.asarray(jax.random.categorical(k_samp, jnp.asarray(operations[0]), axis=-1))
    ind = np.where(act != 0)[0]
    row_ind, col_ind = simple_matcher(outputs, targets, ind)
    op_gt = crit.create_gt_operation(outputs, targets)
    ref_op = np.abs(np.asarray(operations[0]) - op_gt).sum() / N_Q
    if len(row_ind) != 0:
        src_b = np.asarray(pred_boxes[0])[row_ind]
        tgt_b = np.asarray(gt2['boxes'])[col_ind]
        nb = len(row_ind)
    else:
        src_b = np.asarray(pred_boxes[0])[:len(gt2['boxes'])]
        tgt_b = np.asarray(gt2['boxes'])
        nb = len(gt2['boxes'])
    ref_l1, ref_giou = _np_box_losses(src_b, tgt_b)

    np.testing.assert_allclose(float(losses['operations']), ref_op, rtol=1e-4, atol=1e-5)
    np.testing.assert_allclose(float(losses['loss_bbox']), ref_l1 / nb, rtol=1e-4, atol=1e-5)
    # exact divides now (no approx reciprocal) -> tight tolerance
    np.testing.assert_allclose(float(losses['loss_giou']), ref_giou / nb, rtol=1e-4, atol=1e-5)

    print("KERNEL_OK")
</pallas_src>

<mosaic_0001>
module attributes {stable_mosaic.version = 11 : i64} {
  func.func @_fused_loss_kernel(%arg0: memref<24x128xf32, #tpu.memory_space<vmem>>, %arg1: memref<2x128xi32, #tpu.memory_space<vmem>>, %arg2: memref<8x128xf32, #tpu.memory_space<vmem>>) attributes {dimension_semantics = [], scalar_prefetch = 0 : i64, scratch_operands = 0 : i64, tpu.core_type = #tpu.core_type<tc>} {
    %c0 = arith.constant 0 : index
    %c0_0 = arith.constant 0 : index
    %0 = vector.load %arg0[%c0, %c0_0] : memref<24x128xf32, #tpu.memory_space<vmem>>, vector<4x128xf32>
    %c4 = arith.constant 4 : index
    %c0_1 = arith.constant 0 : index
    %1 = vector.load %arg0[%c4, %c0_1] : memref<24x128xf32, #tpu.memory_space<vmem>>, vector<4x128xf32>
    %c8 = arith.constant 8 : index
    %c0_2 = arith.constant 0 : index
    %2 = vector.load %arg0[%c8, %c0_2] : memref<24x128xf32, #tpu.memory_space<vmem>>, vector<1x128xf32>
    %c9 = arith.constant 9 : index
    %c0_3 = arith.constant 0 : index
    %3 = vector.load %arg0[%c9, %c0_3] : memref<24x128xf32, #tpu.memory_space<vmem>>, vector<1x128xf32>
    %c16 = arith.constant 16 : index
    %c0_4 = arith.constant 0 : index
    %4 = vector.load %arg0[%c16, %c0_4] : memref<24x128xf32, #tpu.memory_space<vmem>>, vector<4x128xf32>
    %c20 = arith.constant 20 : index
    %c0_5 = arith.constant 0 : index
    %5 = vector.load %arg0[%c20, %c0_5] : memref<24x128xf32, #tpu.memory_space<vmem>>, vector<4x128xf32>
    %6 = arith.subf %4, %0 : vector<4x128xf32>
    %7 = math.absf %6 : vector<4x128xf32>
    %cst = arith.constant dense<0.000000e+00> : vector<128xf32>
    %8 = vector.multi_reduction <add>, %7, %cst [0] : vector<4x128xf32> to vector<128xf32>
    %9 = vector.shape_cast %8 : vector<128xf32> to vector<1x128xf32>
    %10 = arith.mulf %9, %2 : vector<1x128xf32>
    %11 = tpu.iota {dimensions = array<i32: 0>} : vector<128x128xi32>
    %c0_6 = arith.constant 0 : index
    %c0_7 = arith.constant 0 : index
    %12 = vector.load %arg1[%c0_6, %c0_7] : memref<2x128xi32, #tpu.memory_space<vmem>>, vector<1x128xi32>
    %c1 = arith.constant 1 : index
    %c0_8 = arith.constant 0 : index
    %13 = vector.load %arg1[%c1, %c0_8] : memref<2x128xi32, #tpu.memory_space<vmem>>, vector<1x128xi32>
    %14 = vector.broadcast %12 : vector<1x128xi32> to vector<128x128xi32>
    %15 = arith.cmpi eq, %11, %14 : vector<128x128xi32>
    %16 = arith.extui %15 : vector<128x128xi1> to vector<128x128xi32>
    %17 = arith.sitofp %16 : vector<128x128xi32> to vector<128x128xf32>
    %18 = vector.broadcast %13 : vector<1x128xi32> to vector<128x128xi32>
    %19 = arith.cmpi eq, %11, %18 : vector<128x128xi32>
    %20 = arith.extui %19 : vector<128x128xi1> to vector<128x128xi32>
    %21 = arith.sitofp %20 : vector<128x128xi32> to vector<128x128xf32>
    %cst_9 = arith.constant dense<0.000000e+00> : vector<4x128xf32>
    %22 = tpu.matmul %5, %17, %cst_9 {dimension_numbers = #tpu.dot_dimension_numbers<[1], [0], [0], [1], [0, 0, 1, 1], [], []>} : vector<4x128xf32>, vector<128x128xf32>, vector<4x128xf32> -> vector<4x128xf32>
    %cst_10 = arith.constant dense<0.000000e+00> : vector<4x128xf32>
    %23 = tpu.matmul %1, %21, %cst_10 {dimension_numbers = #tpu.dot_dimension_numbers<[1], [0], [0], [1], [0, 0, 1, 1], [], []>} : vector<4x128xf32>, vector<128x128xf32>, vector<4x128xf32> -> vector<4x128xf32>
    %24 = arith.subf %22, %23 : vector<4x128xf32>
    %25 = math.absf %24 : vector<4x128xf32>
    %cst_11 = arith.constant dense<0.000000e+00> : vector<128xf32>
    %26 = vector.multi_reduction <add>, %25, %cst_11 [0] : vector<4x128xf32> to vector<128xf32>
    %27 = vector.shape_cast %26 : vector<128xf32> to vector<1x128xf32>
    %28 = arith.mulf %27, %3 : vector<1x128xf32>
    %29 = vector.extract_strided_slice %22 {offsets = [2, 0], sizes = [2, 128], strides = [1, 1]} : vector<4x128xf32> to vector<2x128xf32>
    %30 = vector.extract_strided_slice %23 {offsets = [2, 0], sizes = [2, 128], strides = [1, 1]} : vector<4x128xf32> to vector<2x128xf32>
    %31 = vector.extract_strided_slice %22 {offsets = [0, 0], sizes = [2, 128], strides = [1, 1]} : vector<4x128xf32> to vector<2x128xf32>
    %cst_12 = arith.constant 5.000000e-01 : f32
    %32 = vector.broadcast %cst_12 : f32 to vector<2x128xf32>
    %33 = arith.mulf %32, %29 : vector<2x128xf32>
    %34 = arith.subf %31, %33 : vector<2x128xf32>
    %35 = vector.extract_strided_slice %22 {offsets = [0, 0], sizes = [2, 128], strides = [1, 1]} : vector<4x128xf32> to vector<2x128xf32>
    %cst_13 = arith.constant 5.000000e-01 : f32
    %36 = vector.broadcast %cst_13 : f32 to vector<2x128xf32>
    %37 = arith.mulf %36, %29 : vector<2x128xf32>
    %38 = arith.addf %35, %37 : vector<2x128xf32>
    %39 = vector.extract_strided_slice %23 {offsets = [0, 0], sizes = [2, 128], strides = [1, 1]} : vector<4x128xf32> to vector<2x128xf32>
    %cst_14 = arith.constant 5.000000e-01 : f32
    %40 = vector.broadcast %cst_14 : f32 to vector<2x128xf32>
    %41 = arith.mulf %40, %30 : vector<2x128xf32>
    %42 = arith.subf %39, %41 : vector<2x128xf32>
    %43 = vector.extract_strided_slice %23 {offsets = [0, 0], sizes = [2, 128], strides = [1, 1]} : vector<4x128xf32> to vector<2x128xf32>
    %cst_15 = arith.constant 5.000000e-01 : f32
    %44 = vector.broadcast %cst_15 : f32 to vector<2x128xf32>
    %45 = arith.mulf %44, %30 : vector<2x128xf32>
    %46 = arith.addf %43, %45 : vector<2x128xf32>
    %47 = vector.extract_strided_slice %29 {offsets = [0, 0], sizes = [1, 128], strides = [1, 1]} : vector<2x128xf32> to vector<1x128xf32>
    %48 = vector.extract_strided_slice %29 {offsets = [1, 0], sizes = [1, 128], strides = [1, 1]} : vector<2x128xf32> to vector<1x128xf32>
    %49 = arith.mulf %47, %48 : vector<1x128xf32>
    %50 = vector.extract_strided_slice %30 {offsets = [0, 0], sizes = [1, 128], strides = [1, 1]} : vector<2x128xf32> to vector<1x128xf32>
    %51 = vector.extract_strided_slice %30 {offsets = [1, 0], sizes = [1, 128], strides = [1, 1]} : vector<2x128xf32> to vector<1x128xf32>
    %52 = arith.mulf %50, %51 : vector<1x128xf32>
    %53 = arith.minimumf %38, %46 : vector<2x128xf32>
    %54 = arith.maximumf %34, %42 : vector<2x128xf32>
    %55 = arith.subf %53, %54 : vector<2x128xf32>
    %cst_16 = arith.constant 0.000000e+00 : f32
    %56 = vector.broadcast %cst_16 : f32 to vector<2x128xf32>
    %57 = arith.maximumf %55, %56 : vector<2x128xf32>
    %58 = vector.extract_strided_slice %57 {offsets = [0, 0], sizes = [1, 128], strides = [1, 1]} : vector<2x128xf32> to vector<1x128xf32>
    %59 = vector.extract_strided_slice %57 {offsets = [1, 0], sizes = [1, 128], strides = [1, 1]} : vector<2x128xf32> to vector<1x128xf32>
    %60 = arith.mulf %58, %59 : vector<1x128xf32>
    %61 = arith.addf %49, %52 : vector<1x128xf32>
    %62 = arith.subf %61, %60 : vector<1x128xf32>
    %cst_17 = arith.constant 1.000000e-07 : f32
    %63 = vector.broadcast %cst_17 : f32 to vector<1x128xf32>
    %64 = arith.maximumf %62, %63 : vector<1x128xf32>
    %65 = arith.divf %60, %64 : vector<1x128xf32>
    %66 = arith.maximumf %38, %46 : vector<2x128xf32>
    %67 = arith.minimumf %34, %42 : vector<2x128xf32>
    %68 = arith.subf %66, %67 : vector<2x128xf32>
    %cst_18 = arith.constant 0.000000e+00 : f32
    %69 = vector.broadcast %cst_18 : f32 to vector<2x128xf32>
    %70 = arith.maximumf %68, %69 : vector<2x128xf32>
    %71 = vector.extract_strided_slice %70 {offsets = [0, 0], sizes = [1, 128], strides = [1, 1]} : vector<2x128xf32> to vector<1x128xf32>
    %72 = vector.extract_strided_slice %70 {offsets = [1, 0], sizes = [1, 128], strides = [1, 1]} : vector<2x128xf32> to vector<1x128xf32>
    %73 = arith.mulf %71, %72 : vector<1x128xf32>
    %74 = arith.subf %73, %62 : vector<1x128xf32>
    %cst_19 = arith.constant 1.000000e-07 : f32
    %75 = vector.broadcast %cst_19 : f32 to vector<1x128xf32>
    %76 = arith.maximumf %73, %75 : vector<1x128xf32>
    %77 = arith.divf %74, %76 : vector<1x128xf32>
    %78 = arith.subf %65, %77 : vector<1x128xf32>
    %cst_20 = arith.constant 1.000000e+00 : f32
    %79 = vector.broadcast %cst_20 : f32 to vector<1x128xf32>
    %80 = arith.subf %79, %78 : vector<1x128xf32>
    %81 = arith.mulf %80, %3 : vector<1x128xf32>
    %c0_21 = arith.constant 0 : index
    %c0_22 = arith.constant 0 : index
    %82 = vector.load %arg2[%c0_21, %c0_22] : memref<8x128xf32, #tpu.memory_space<vmem>>, vector<1x128xf32>
    tpu.vector_store %arg2[%c0_21, %c0_22], %10 {strides = array<i32>} : memref<8x128xf32, #tpu.memory_space<vmem>>, vector<1x128xf32>,
    %c1_23 = arith.constant 1 : index
    %c0_24 = arith.constant 0 : index
    %83 = vector.load %arg2[%c1_23, %c0_24] : memref<8x128xf32, #tpu.memory_space<vmem>>, vector<1x128xf32>
    tpu.vector_store %arg2[%c1_23, %c0_24], %28 {strides = array<i32>} : memref<8x128xf32, #tpu.memory_space<vmem>>, vector<1x128xf32>,
    %c2 = arith.constant 2 : index
    %c0_25 = arith.constant 0 : index
    %84 = vector.load %arg2[%c2, %c0_25] : memref<8x128xf32, #tpu.memory_space<vmem>>, vector<1x128xf32>
    tpu.vector_store %arg2[%c2, %c0_25], %81 {strides = array<i32>} : memref<8x128xf32, #tpu.memory_space<vmem>>, vector<1x128xf32>,
    %cst_26 = arith.constant 0.000000e+00 : f32
    %85 = vector.broadcast %cst_26 : f32 to vector<5x128xf32>
    %c3 = arith.constant 3 : index
    %c0_27 = arith.constant 0 : index
    %86 = vector.load %arg2[%c3, %c0_27] : memref<8x128xf32, #tpu.memory_space<vmem>>, vector<5x128xf32>
    tpu.vector_store %arg2[%c3, %c0_27], %85 {strides = array<i32>} : memref<8x128xf32, #tpu.memory_space<vmem>>, vector<5x128xf32>,
    return
  }
}

</mosaic_0001>

<llo_original>
// kernel: _compute_losses.1
$region0: #{_compute_losses.1}
  #allocation0 [shape = 'u32[]', space=smem, size = 0x4, offset = 0x4, fixed_abs, tag = 'smem constant byte address 0x4 - core index']
  #allocation1 [shape = 'u32[144,128]{1,0:T(1,128)}', space=vmem, size = 0x12000, scoped, tag = 'internal scratch']
  %s0 = inlined_call_operand.vmem [shape: f32[24,128], index: 0, kind: input, shape index: {}]
  %s1 = inlined_call_operand.vmem [shape: s32[2,128], index: 1, kind: input, shape index: {}]
  %s2 = inlined_call_operand.vmem [shape: f32[8,128], index: 2, kind: output, shape index: {}]
  %s3 = sld [smem:[#allocation0]]
  $region18: #{_compute_losses.1} parent=0
    _
  %s5 = ssub.s32 1, %s3
  %s6 = scalar_select 0, %s5, %s3
  // Predicated region
  $region2: #{_compute_losses.1} parent=0 // pred_check
    _
  $region3: #{_compute_losses.1} parent=0 // pred_check_branch
    %8 = sbr.rel (0) target = $region5
  $region4: #{_compute_losses.1} parent=0 // pred_region
    _
  $region5: #{_compute_losses.1} parent=0 // pred_fallthru
    _
  // Predicated region
  $region6: #{_compute_losses.1} parent=0 // pred_check
    _
  $region7: #{_compute_losses.1} parent=0 // pred_check_branch
    %10 = sbr.rel (0) target = $region9
  $region8: #{_compute_losses.1} parent=0 // pred_region
    _
  $region9: #{_compute_losses.1} parent=0 // pred_fallthru
    _
  %v11 = vld [vmem:[%s0] sm:$0xf]
  %v12 = vld [vmem:[%s0 + $0x4] sm:$0xf]
  %v13 = vld [vmem:[%s0 + $0x8] sm:$0x1]
  %v14 = vld [vmem:[%s0 + $0x9] sm:$0x1]
  %v15 = vld [vmem:[%s0 + $0x10] sm:$0xf]
  %v16 = vld [vmem:[%s0 + $0x14] sm:$0xf]
  %v17 = vsub.f32 %v15, %v11
  %v18 = vand.u32 2147483647, %v17
  %vm19 = vcmask 1043456
  %v20 = vsel %vm19, %v18, 0.0
  %v21 = vrot.slane %v20, 4
  %v22 = vadd.f32 %v20, %v21
  %v23 = vrot.slane %v22, 2
  %v24 = vadd.f32 %v22, %v23
  %v25 = vrot.slane %v24, 1
  %v26 = vadd.f32 %v24, %v25
  %v27 = vmul.f32 %v26, %v13
  %v28 = vlaneseq
  %v29 = vshrl.u32 %v28, 7
  %v30 = vadd.s32 %v29, 8
  %v31 = vadd.s32 %v29, 16
  %v32 = vadd.s32 %v29, 24
  %v33 = vadd.s32 %v29, 32
  %v34 = vadd.s32 %v29, 40
  %v35 = vadd.s32 %v29, 48
  %v36 = vadd.s32 %v29, 56
  %v37 = vadd.s32 %v29, 64
  %v38 = vadd.s32 %v29, 72
  %v39 = vadd.s32 %v29, 80
  %v40 = vadd.s32 %v29, 88
  %v41 = vadd.s32 %v29, 96
  %v42 = vadd.s32 %v29, 104
  %v43 = vadd.s32 %v29, 112
  %v44 = vadd.s32 %v29, 120
  %v45 = vld [vmem:[%s1] sm:$0x1]
  %v46 = vld [vmem:[%s1 + $0x1] sm:$0x1]
  %v47 = vlaneseq
  %v48 = vshrl.u32 %v47, 7
  %v49 = vsub.s32 0, %v48
  %v50 = vrot.slane %v45, %v49
  %vm51 = vcmp.eq.s32.totalorder %v29, %v50
  %vm52 = vcmp.eq.s32.totalorder %v30, %v50
  %vm53 = vcmp.eq.s32.totalorder %v31, %v50
  %vm54 = vcmp.eq.s32.totalorder %v32, %v50
  %vm55 = vcmp.eq.s32.totalorder %v33, %v50
  %vm56 = vcmp.eq.s32.totalorder %v34, %v50
  %vm57 = vcmp.eq.s32.totalorder %v35, %v50
  %vm58 = vcmp.eq.s32.totalorder %v36, %v50
  %vm59 = vcmp.eq.s32.totalorder %v37, %v50
  %vm60 = vcmp.eq.s32.totalorder %v38, %v50
  %vm61 = vcmp.eq.s32.totalorder %v39, %v50
  %vm62 = vcmp.eq.s32.totalorder %v40, %v50
  %vm63 = vcmp.eq.s32.totalorder %v41, %v50
  %vm64 = vcmp.eq.s32.totalorder %v42, %v50
  %vm65 = vcmp.eq.s32.totalorder %v43, %v50
  %vm66 = vcmp.eq.s32.totalorder %v44, %v50
  %v67 = vsel %vm51, 1, 0
  %v68 = vsel %vm52, 1, 0
  %v69 = vsel %vm53, 1, 0
  %v70 = vsel %vm54, 1, 0
  %v71 = vsel %vm55, 1, 0
  %v72 = vsel %vm56, 1, 0
  %v73 = vsel %vm57, 1, 0
  %v74 = vsel %vm58, 1, 0
  %v75 = vsel %vm59, 1, 0
  %v76 = vsel %vm60, 1, 0
  %v77 = vsel %vm61, 1, 0
  %v78 = vsel %vm62, 1, 0
  %v79 = vsel %vm63, 1, 0
  %v80 = vsel %vm64, 1, 0
  %v81 = vsel %vm65, 1, 0
  %v82 = vsel %vm66, 1, 0
  %v83 = vcvt.s32.f32 %v67
  %v84 = vcvt.s32.f32 %v68
  %v85 = vcvt.s32.f32 %v69
  %v86 = vcvt.s32.f32 %v70
  %v87 = vcvt.s32.f32 %v71
  %v88 = vcvt.s32.f32 %v72
  %v89 = vcvt.s32.f32 %v73
  %v90 = vcvt.s32.f32 %v74
  %v91 = vcvt.s32.f32 %v75
  %v92 = vcvt.s32.f32 %v76
  %v93 = vcvt.s32.f32 %v77
  %v94 = vcvt.s32.f32 %v78
  %v95 = vcvt.s32.f32 %v79
  %v96 = vcvt.s32.f32 %v80
  %v97 = vcvt.s32.f32 %v81
  %v98 = vcvt.s32.f32 %v82
  %v99 = vlaneseq
  %v100 = vshrl.u32 %v99, 7
  %v101 = vsub.s32 0, %v100
  %v102 = vrot.slane %v46, %v101
  %vm103 = vcmp.eq.s32.totalorder %v29, %v102
  %vm104 = vcmp.eq.s32.totalorder %v30, %v102
  %vm105 = vcmp.eq.s32.totalorder %v31, %v102
  %vm106 = vcmp.eq.s32.totalorder %v32, %v102
  %vm107 = vcmp.eq.s32.totalorder %v33, %v102
  %vm108 = vcmp.eq.s32.totalorder %v34, %v102
  %vm109 = vcmp.eq.s32.totalorder %v35, %v102
  %vm110 = vcmp.eq.s32.totalorder %v36, %v102
  %vm111 = vcmp.eq.s32.totalorder %v37, %v102
  %vm112 = vcmp.eq.s32.totalorder %v38, %v102
  %vm113 = vcmp.eq.s32.totalorder %v39, %v102
  %vm114 = vcmp.eq.s32.totalorder %v40, %v102
  %vm115 = vcmp.eq.s32.totalorder %v41, %v102
  %vm116 = vcmp.eq.s32.totalorder %v42, %v102
  %vm117 = vcmp.eq.s32.totalorder %v43, %v102
  %vm118 = vcmp.eq.s32.totalorder %v44, %v102
  %v119 = vsel %vm103, 1, 0
  %v120 = vsel %vm104, 1, 0
  %v121 = vsel %vm105, 1, 0
  %v122 = vsel %vm106, 1, 0
  %v123 = vsel %vm107, 1, 0
  %v124 = vsel %vm108, 1, 0
  %v125 = vsel %vm109, 1, 0
  %v126 = vsel %vm110, 1, 0
  %v127 = vsel %vm111, 1, 0
  %v128 = vsel %vm112, 1, 0
  %v129 = vsel %vm113, 1, 0
  %v130 = vsel %vm114, 1, 0
  %v131 = vsel %vm115, 1, 0
  %v132 = vsel %vm116, 1, 0
  %v133 = vsel %vm117, 1, 0
  %v134 = vsel %vm118, 1, 0
  %v135 = vcvt.s32.f32 %v119
  %v136 = vcvt.s32.f32 %v120
  %v137 = vcvt.s32.f32 %v121
  %v138 = vcvt.s32.f32 %v122
  %v139 = vcvt.s32.f32 %v123
  %v140 = vcvt.s32.f32 %v124
  %v141 = vcvt.s32.f32 %v125
  %v142 = vcvt.s32.f32 %v126
  %v143 = vcvt.s32.f32 %v127
  %v144 = vcvt.s32.f32 %v128
  %v145 = vcvt.s32.f32 %v129
  %v146 = vcvt.s32.f32 %v130
  %v147 = vcvt.s32.f32 %v131
  %v148 = vcvt.s32.f32 %v132
  %v149 = vcvt.s32.f32 %v133
  %v150 = vcvt.s32.f32 %v134
  %151 = vmatprep.subr.mxu0 0.0
  %152 = vmatpush1.msra.mxu0 %v83
  %153 = vmatprep.subr.mxu0 0.0
  %154 = vmatpush1.msra.mxu0 %v84
  %155 = vmatprep.subr.mxu0 0.0
  %156 = vmatpush1.msra.mxu0 %v85
  %157 = vmatprep.subr.mxu0 0.0
  %158 = vmatpush1.msra.mxu0 %v86
  %159 = vmatprep.subr.mxu0 0.0
  %160 = vmatpush1.msra.mxu0 %v87
  %161 = vmatprep.subr.mxu0 0.0
  %162 = vmatpush1.msra.mxu0 %v88
  %163 = vmatprep.subr.mxu0 0.0
  %164 = vmatpush1.msra.mxu0 %v89
  %165 = vmatprep.subr.mxu0 0.0
  %166 = vmatpush1.msra.mxu0 %v90
  %167 = vmatprep.subr.mxu0 0.0
  %168 = vmatpush1.msra.mxu0 %v91
  %169 = vmatprep.subr.mxu0 0.0
  %170 = vmatpush1.msra.mxu0 %v92
  %171 = vmatprep.subr.mxu0 0.0
  %172 = vmatpush1.msra.mxu0 %v93
  %173 = vmatprep.subr.mxu0 0.0
  %174 = vmatpush1.msra.mxu0 %v94
  %175 = vmatprep.subr.mxu0 0.0
  %176 = vmatpush1.msra.mxu0 %v95
  %177 = vmatprep.subr.mxu0 0.0
  %178 = vmatpush1.msra.mxu0 %v96
  %179 = vmatprep.subr.mxu0 0.0
  %180 = vmatpush1.msra.mxu0 %v97
  %181 = vmatprep.subr.mxu0 0.0
  %182 = vmatpush1.msra.mxu0 %v98
  %183 = vmatprep.subr.mxu0 0.0
  %184 = vmatpush1.msra.mxu0 0.0
  %185 = vmatprep.subr.mxu0 0.0
  %186 = vmatpush1.msra.mxu0 0.0
  %187 = vmatprep.subr.mxu0 0.0
  %188 = vmatpush1.msra.mxu0 0.0
  %189 = vmatprep.subr.mxu0 0.0
  %190 = vmatpush1.msra.mxu0 0.0
  %191 = vmatprep.subr.mxu0 0.0
  %192 = vmatpush1.msra.mxu0 0.0
  %193 = vmatprep.subr.mxu0 0.0
  %194 = vmatpush1.msra.mxu0 0.0
  %195 = vmatprep.subr.mxu0 0.0
  %196 = vmatpush1.msra.mxu0 0.0
  %197 = vmatprep.subr.mxu0 0.0
  %198 = vmatpush1.msra.mxu0 0.0
  %199 = vmatprep.subr.mxu0 0.0
  %200 = vmatpush1.msra.mxu0 0.0
  %201 = vmatprep.subr.mxu0 0.0
  %202 = vmatpush1.msra.mxu0 0.0
  %203 = vmatprep.subr.mxu0 0.0
  %204 = vmatpush1.msra.mxu0 0.0
  %205 = vmatprep.subr.mxu0 0.0
  %206 = vmatpush1.msra.mxu0 0.0
  %207 = vmatprep.subr.mxu0 0.0
  %208 = vmatpush1.msra.mxu0 0.0
  %209 = vmatprep.subr.mxu0 0.0
  %210 = vmatpush1.msra.mxu0 0.0
  %211 = vmatprep.subr.mxu0 0.0
  %212 = vmatpush1.msra.mxu0 0.0
  %213 = vmatprep.subr.mxu0 0.0
  %214 = vmatpush1.msra.mxu0 0.0
  %215 = vmatprep.mubr.f32.mxu0 0.0
  %216 = vmatmul.mubr.f32.gmra.mrb[0].mxu0 %v16
  %v217 = vpop.f32.mrb[0].mxu0
  %v218 = vadd.f32 0.0, %v217
  %v219 = vpop.f32.mrb[0].mxu0
  %220 = vdwg.mxu0
  %221 = vmatprep.subr.mxu0 0.0
  %222 = vmatpush1.msra.mxu0 %v135
  %223 = vmatprep.subr.mxu0 0.0
  %224 = vmatpush1.msra.mxu0 %v136
  %225 = vmatprep.subr.mxu0 0.0
  %226 = vmatpush1.msra.mxu0 %v137
  %227 = vmatprep.subr.mxu0 0.0
  %228 = vmatpush1.msra.mxu0 %v138
  %229 = vmatprep.subr.mxu0 0.0
  %230 = vmatpush1.msra.mxu0 %v139
  %231 = vmatprep.subr.mxu0 0.0
  %232 = vmatpush1.msra.mxu0 %v140
  %233 = vmatprep.subr.mxu0 0.0
  %234 = vmatpush1.msra.mxu0 %v141
  %235 = vmatprep.subr.mxu0 0.0
  %236 = vmatpush1.msra.mxu0 %v142
  %237 = vmatprep.subr.mxu0 0.0
  %238 = vmatpush1.msra.mxu0 %v143
  %239 = vmatprep.subr.mxu0 0.0
  %240 = vmatpush1.msra.mxu0 %v144
  %241 = vmatprep.subr.mxu0 0.0
  %242 = vmatpush1.msra.mxu0 %v145
  %243 = vmatprep.subr.mxu0 0.0
  %244 = vmatpush1.msra.mxu0 %v146
  %245 = vmatprep.subr.mxu0 0.0
  %246 = vmatpush1.msra.mxu0 %v147
  %247 = vmatprep.subr.mxu0 0.0
  %248 = vmatpush1.msra.mxu0 %v148
  %249 = vmatprep.subr.mxu0 0.0
  %250 = vmatpush1.msra.mxu0 %v149
  %251 = vmatprep.subr.mxu0 0.0
  %252 = vmatpush1.msra.mxu0 %v150
  %253 = vmatprep.subr.mxu0 0.0
  %254 = vmatpush1.msra.mxu0 0.0
  %255 = vmatprep.subr.mxu0 0.0
  %256 = vmatpush1.msra.mxu0 0.0
  %257 = vmatprep.subr.mxu0 0.0
  %258 = vmatpush1.msra.mxu0 0.0
  %259 = vmatprep.subr.mxu0 0.0
  %260 = vmatpush1.msra.mxu0 0.0
  %261 = vmatprep.subr.mxu0 0.0
  %262 = vmatpush1.msra.mxu0 0.0
  %263 = vmatprep.subr.mxu0 0.0
  %264 = vmatpush1.msra.mxu0 0.0
  %265 = vmatprep.subr.mxu0 0.0
  %266 = vmatpush1.msra.mxu0 0.0
  %267 = vmatprep.subr.mxu0 0.0
  %268 = vmatpush1.msra.mxu0 0.0
  %269 = vmatprep.subr.mxu0 0.0
  %270 = vmatpush1.msra.mxu0 0.0
  %271 = vmatprep.subr.mxu0 0.0
  %272 = vmatpush1.msra.mxu0 0.0
  %273 = vmatprep.subr.mxu0 0.0
  %274 = vmatpush1.msra.mxu0 0.0
  %275 = vmatprep.subr.mxu0 0.0
  %276 = vmatpush1.msra.mxu0 0.0
  %277 = vmatprep.subr.mxu0 0.0
  %278 = vmatpush1.msra.mxu0 0.0
  %279 = vmatprep.subr.mxu0 0.0
  %280 = vmatpush1.msra.mxu0 0.0
  %281 = vmatprep.subr.mxu0 0.0
  %282 = vmatpush1.msra.mxu0 0.0
  %283 = vmatprep.subr.mxu0 0.0
  %284 = vmatpush1.msra.mxu0 0.0
  %285 = vmatprep.mubr.f32.mxu0 0.0
  %286 = vmatmul.mubr.f32.gmra.mrb[0].mxu0 %v12
  %v287 = vpop.f32.mrb[0].mxu0
  %v288 = vadd.f32 0.0, %v287
  %v289 = vpop.f32.mrb[0].mxu0
  %290 = vdwg.mxu0
  %v291 = vsub.f32 %v218, %v288
  %v292 = vand.u32 2147483647, %v291
  %v293 = vsel %vm19, %v292, 0.0
  %v294 = vrot.slane %v293, 4
  %v295 = vadd.f32 %v293, %v294
  %v296 = vrot.slane %v295, 2
  %v297 = vadd.f32 %v295, %v296
  %v298 = vrot.slane %v297, 1
  %v299 = vadd.f32 %v297, %v298
  %v300 = vmul.f32 %v299, %v14
  %v301 = vmul.f32 %v218, 0.5
  %v303 = vrot.slane %v301, 2
  %v305 = vsub.f32 %v218, %v303
  %v306 = vadd.f32 %v218, %v303
  %v307 = vmul.f32 %v288, 0.5
  %v309 = vrot.slane %v307, 2
  %v311 = vsub.f32 %v288, %v309
  %v312 = vadd.f32 %v288, %v309
  %v314 = vrot.slane %v218, 1
  %v316 = vmul.f32 %v218, %v314
  %v318 = vrot.slane %v288, 1
  %v320 = vmul.f32 %v288, %v318
  %v321 = vmin.f32 %v306, %v312
  %v322 = vmax.f32 %v305, %v311
  %v323 = vsub.f32 %v321, %v322
  %v324 = vmax.f32 %v323, 0.0
  %v326 = vrot.slane %v324, 1
  %v328 = vmul.f32 %v324, %v326
  %v329 = vadd.f32 %v316, %v320
  %v331 = vrot.slane %v328, 6
  %v333 = vsub.f32 %v329, %v331
  %v334 = vmax.f32 %v333, 1e-07
  %v336 = vrot.slane %v334, 2
  %v338 = vrcp.pop %v336
  %v339 = vmul.f32 %v328, %v338
  %v340 = vmax.f32 %v306, %v312
  %v341 = vmin.f32 %v305, %v311
  %v342 = vsub.f32 %v340, %v341
  %v343 = vmax.f32 %v342, 0.0
  %v345 = vrot.slane %v343, 1
  %v347 = vmul.f32 %v343, %v345
  %v349 = vrot.slane %v333, 2
  %v351 = vsub.f32 %v347, %v349
  %v352 = vmax.f32 %v347, 1e-07
  %v353 = vrcp.pop %v352
  %v354 = vmul.f32 %v351, %v353
  %v355 = vsub.f32 %v339, %v354
  %v356 = vsub.f32 1.0, %v355
  %v357 = vmul.f32 %v356, %v14
  %358 = vst [vmem:[%s2] sm:$0x1] %v27
  %359 = vst [vmem:[%s2 + $0x1] sm:$0x1] %v300
  %360 = vst [vmem:[%s2 + $0x2] sm:$0x1] %v357
  %361 = vst [vmem:[%s2 + $0x3] sm:$0x1f] 0.0
  // Predicated region
  $region10: #{_compute_losses.1} parent=0 // pred_check
    _
  $region11: #{_compute_losses.1} parent=0 // pred_check_branch
    %363 = sbr.rel (0) target = $region13
  $region12: #{_compute_losses.1} parent=0 // pred_region
    _
  $region13: #{_compute_losses.1} parent=0 // pred_fallthru
    _
  // Predicated region
  $region14: #{_compute_losses.1} parent=0 // pred_check
    _
  $region15: #{_compute_losses.1} parent=0 // pred_check_branch
    %365 = sbr.rel (0) target = $region17
  $region16: #{_compute_losses.1} parent=0 // pred_region
    _
  $region17: #{_compute_losses.1} parent=0 // pred_fallthru
    _

</llo_original>
